<compile_context>
chip_gen: v5e
topology: v5e:2x2
jax: 0.10.0
libtpu: 0.0.40
codegen_flags: <defaults>
</compile_context>

<pallas_src>
import jax
import jax.numpy as jnp
from jax.experimental import pallas as pl
from jax.experimental.pallas import tpu as pltpu


def _bahdanau_block_kernel(q_ref, kflat_ref, v_ref,
                           wq_ref, wk_ref, bqk_ref, wo_ref,
                           ctx_ref, attn_ref):
    TB, S, V = v_ref.shape
    A = wq_ref.shape[1]

    # q_layer(query) with bq+bk folded in: one (TB, Q) @ (Q, A) MXU matmul.
    qa = jnp.dot(q_ref[...], wq_ref[...],
                 preferred_element_type=jnp.float32) + bqk_ref[...]       # (TB, A)

    # k_layer(key): key arrives pre-flattened, one (TB*S, K) @ (K, A) matmul.
    ka = jnp.dot(kflat_ref[...], wk_ref[...],
                 preferred_element_type=jnp.float32)                      # (TB*S, A)

    # tanh(q_proj + k_proj); ka viewed (TB, S, A) only here (single consumer,
    # the lane axis A is untouched so no relayout of the operand feeding tanh).
    h = jnp.tanh(ka.reshape(TB, S, A) + qa[:, None, :])                   # (TB, S, A)

    # o_layer as a lane reduction against the (1, A) weight row (XLU slot).
    # bo is a no-op under softmax and has been dropped entirely.
    score = jnp.sum(h * wo_ref[...], axis=-1)                             # (TB, S)

    # softmax over the sequence axis (S on lanes); EUP approximate reciprocal.
    m = jnp.max(score, axis=-1, keepdims=True)
    e = jnp.exp(score - m)
    attn = e * pl.reciprocal(jnp.sum(e, axis=-1, keepdims=True),
                             approx=True)                                 # (TB, S)

    # context = sum_s attn[b,s] * v[b,s,:]  — VPU multiply + sublane reduce
    # (no M=1 batched vmatmuls).
    v_f32 = v_ref[...].astype(jnp.float32)
    ctx = jnp.sum(attn[:, :, None] * v_f32, axis=1)                       # (TB, V)

    ctx_ref[...] = ctx.astype(ctx_ref.dtype)
    attn_ref[...] = attn.astype(attn_ref.dtype)


def _pick_tb(B, tb):
    """Pick the batch tile: big to amortize per-step overhead / fill MXU M,
    but keep >= 2 grid blocks when B allows so v7x's 2 TCs both get work."""
    if tb is None:
        tb = 256                      # fills MXU M on v6e/v7x; fine on v5e
    tb = max(8, (tb // 8) * 8)        # (8, 128) sublane rule on block dims
    b8 = ((B + 7) // 8) * 8
    if tb >= b8:
        # Whole batch fits in one block: split in two if possible (megacore);
        # the extra grid step costs ~0.35 us on single-TC chips.
        tb = b8 if b8 < 16 else ((b8 // 2 + 7) // 8) * 8
    return tb


def bahdanau_attention(query, key, value, params, *, tb=None, kv_dtype=None):
    """query:(B,Q) key:(B,S,K) value:(B,S,V) -> (context:(B,V), attn:(B,S))."""
    B, Q = query.shape
    _, S, K = key.shape
    V = value.shape[-1]
    A = params["wq"].shape[1]

    tb = _pick_tb(B, tb)
    Bp = ((B + tb - 1) // tb) * tb
    if Bp != B:
        pad = Bp - B
        query = jnp.pad(query, ((0, pad), (0, 0)))
        key = jnp.pad(key, ((0, pad), (0, 0), (0, 0)))
        value = jnp.pad(value, ((0, pad), (0, 0), (0, 0)))

    if kv_dtype is not None:          # e.g. jnp.bfloat16 on v6e/v7x when BW-bound
        key = key.astype(kv_dtype)
        value = value.astype(kv_dtype)

    # Pre-flatten key so the kernel never reshapes its MXU operand.
    key_flat = key.reshape(Bp * S, K)

    # Fold biases: bq + bk added once to qa; bo dropped (softmax-invariant).
    bqk = (params["bq"] + params["bk"]).reshape(1, A).astype(jnp.float32)
    wo_row = params["wo"].reshape(1, A)     # (A,1) weight as a lane-dense row

    full = lambda i: (0, 0)                 # weights: same block every step
    grid = Bp // tb

    ctx, attn = pl.pallas_call(
        _bahdanau_block_kernel,
        out_shape=(
            jax.ShapeDtypeStruct((Bp, V), query.dtype),
            jax.ShapeDtypeStruct((Bp, S), query.dtype),
        ),
        grid_spec=pltpu.PrefetchScalarGridSpec(
            num_scalar_prefetch=0,
            grid=(grid,),
            in_specs=[
                pl.BlockSpec((tb, Q), lambda i: (i, 0)),          # query block
                pl.BlockSpec((tb * S, K), lambda i: (i, 0)),      # key, flat
                pl.BlockSpec((tb, S, V), lambda i: (i, 0, 0)),    # value block
                pl.BlockSpec((Q, A), full),                       # W_q (in, out)
                pl.BlockSpec((K, A), full),                       # W_k (in, out)
                pl.BlockSpec((1, A), full),                       # b_q + b_k
                pl.BlockSpec((1, A), full),                       # W_o as a row
            ],
            out_specs=[
                pl.BlockSpec((tb, V), lambda i: (i, 0)),          # context
                pl.BlockSpec((tb, S), lambda i: (i, 0)),          # attn weights
            ],
        ),
        compiler_params=pltpu.CompilerParams(
            dimension_semantics=("parallel",),    # batch blocks shard across TCs
            # tb<=256 blocks are ~2-3 MiB double-buffered: well under the 64 MiB
            # physical VMEM of v7x and the default scoped limits elsewhere.
            vmem_limit_bytes=32 * 1024 * 1024,
        ),
    )(query, key_flat, value,
      params["wq"], params["wk"], bqk, wo_row)

    return ctx[:B], attn[:B]


def init_params(key, query_dim, key_dim, attention_dim, dtype=jnp.float32):
    """Deterministic init mimicking nn.Linear's U(-1/sqrt(fan_in), 1/sqrt(fan_in)).
    Weights are stored pre-transposed as (in_dim, out_dim)."""
    ks = jax.random.split(key, 6)

    def lin(kw, kb, fan_in, fan_out):
        bound = 1.0 / (fan_in ** 0.5)
        w = jax.random.uniform(kw, (fan_in, fan_out), dtype, -bound, bound)
        b = jax.random.uniform(kb, (fan_out,), dtype, -bound, bound)
        return w, b

    wq, bq = lin(ks[0], ks[1], query_dim, attention_dim)
    wk, bk = lin(ks[2], ks[3], key_dim, attention_dim)
    wo, bo = lin(ks[4], ks[5], attention_dim, 1)
    return {"wq": wq, "bq": bq, "wk": wk, "bk": bk, "wo": wo, "bo": bo}


def _reference(query, key, value, p):
    # Pure-JAX reference matching the PyTorch forward (incl. the bo bias; it
    # cancels in the softmax so the kernel, which drops it, must still match).
    qa = query[:, None, :] @ p["wq"] + p["bq"]                 # (B,1,A)
    ka = key @ p["wk"] + p["bk"]                               # (B,S,A)
    score = jnp.tanh(qa + ka) @ p["wo"] + p["bo"]              # (B,S,1)
    attn = jax.nn.softmax(score, axis=1)                       # (B,S,1)
    ctx = jnp.einsum("bsa,bsv->bav", attn, value)              # (B,1,V)
    return jnp.squeeze(ctx, 1), jnp.squeeze(attn, 2)


if __name__ == "__main__":
    # Small shapes consistent with the module's forward:
    #   query_dim=16, key_dim=32, value_dim=32, attention_dim=32, seq=8.
    # B=16 -> two batch blocks of 8 (so both v7x TensorCores get work).
    B, S = 16, 8
    QD, KD, VD, AD = 16, 32, 32, 32

    root = jax.random.PRNGKey(0)
    k_q, k_k, k_v, k_p = jax.random.split(root, 4)

    query = jax.random.normal(k_q, (B, QD), jnp.float32)
    key = jax.random.normal(k_k, (B, S, KD), jnp.float32)
    value = jax.random.normal(k_v, (B, S, VD), jnp.float32)
    params = init_params(k_p, QD, KD, AD)

    ctx, attn = bahdanau_attention(query, key, value, params)
    jax.block_until_ready((ctx, attn))

    # Sanity check against a pure-JAX reference.
    # (tolerance is relaxed vs. exact f32 because the softmax denominator uses
    #  the EUP approximate reciprocal; error is ~1e-4 relative.)
    ctx_ref, attn_ref = _reference(query, key, value, params)
    assert ctx.shape == (B, VD) and attn.shape == (B, S)
    assert jnp.allclose(attn.sum(axis=-1), 1.0, atol=2e-3)
    assert jnp.allclose(ctx, ctx_ref, atol=2e-3, rtol=2e-3)
    assert jnp.allclose(attn, attn_ref, atol=2e-3, rtol=2e-3)

    print("KERNEL_OK")
</pallas_src>

<mosaic_0001>
module attributes {stable_mosaic.version = 11 : i64} {
  func.func @_bahdanau_block_kernel(%arg0: i32, %arg1: memref<8x16xf32, #tpu.memory_space<vmem>>, %arg2: memref<64x32xf32, #tpu.memory_space<vmem>>, %arg3: memref<8x8x32xf32, #tpu.memory_space<vmem>>, %arg4: memref<16x32xf32, #tpu.memory_space<vmem>>, %arg5: memref<32x32xf32, #tpu.memory_space<vmem>>, %arg6: memref<1x32xf32, #tpu.memory_space<vmem>>, %arg7: memref<1x32xf32, #tpu.memory_space<vmem>>, %arg8: memref<8x32xf32, #tpu.memory_space<vmem>>, %arg9: memref<8x8xf32, #tpu.memory_space<vmem>>) attributes {dimension_semantics = [#tpu.dimension_semantics<parallel>], iteration_bounds = array<i64: 2>, scalar_prefetch = 0 : i64, scratch_operands = 0 : i64, tpu.core_type = #tpu.core_type<tc>, window_params = [{transform_indices = @transform_0, window_bounds = array<i64: 8, 16>}, {transform_indices = @transform_1, window_bounds = array<i64: 64, 32>}, {transform_indices = @transform_2, window_bounds = array<i64: 8, 8, 32>}, {pipeline_mode = #tpu.pipeline_mode<synchronous>, transform_indices = @transform_3, window_bounds = array<i64: 16, 32>}, {pipeline_mode = #tpu.pipeline_mode<synchronous>, transform_indices = @transform_4, window_bounds = array<i64: 32, 32>}, {pipeline_mode = #tpu.pipeline_mode<synchronous>, transform_indices = @transform_5, window_bounds = array<i64: 1, 32>}, {pipeline_mode = #tpu.pipeline_mode<synchronous>, transform_indices = @transform_6, window_bounds = array<i64: 1, 32>}, {transform_indices = @transform_7, window_bounds = array<i64: 8, 32>}, {transform_indices = @transform_8, window_bounds = array<i64: 8, 8>}]} {
    %c0 = arith.constant 0 : index
    %c0_0 = arith.constant 0 : index
    %0 = vector.load %arg1[%c0, %c0_0] : memref<8x16xf32, #tpu.memory_space<vmem>>, vector<8x16xf32>
    %c0_1 = arith.constant 0 : index
    %c0_2 = arith.constant 0 : index
    %1 = vector.load %arg4[%c0_1, %c0_2] : memref<16x32xf32, #tpu.memory_space<vmem>>, vector<16x32xf32>
    %cst = arith.constant dense<0.000000e+00> : vector<8x32xf32>
    %2 = tpu.matmul %0, %1, %cst {dimension_numbers = #tpu.dot_dimension_numbers<[1], [0], [0], [1], [0, 0, 1, 1], [], []>} : vector<8x16xf32>, vector<16x32xf32>, vector<8x32xf32> -> vector<8x32xf32>
    %c0_3 = arith.constant 0 : index
    %c0_4 = arith.constant 0 : index
    %3 = vector.load %arg6[%c0_3, %c0_4] : memref<1x32xf32, #tpu.memory_space<vmem>>, vector<1x32xf32>
    %4 = vector.broadcast %3 : vector<1x32xf32> to vector<8x32xf32>
    %5 = arith.addf %2, %4 : vector<8x32xf32>
    %c0_5 = arith.constant 0 : index
    %c0_6 = arith.constant 0 : index
    %6 = vector.load %arg2[%c0_5, %c0_6] : memref<64x32xf32, #tpu.memory_space<vmem>>, vector<64x32xf32>
    %c0_7 = arith.constant 0 : index
    %c0_8 = arith.constant 0 : index
    %7 = vector.load %arg5[%c0_7, %c0_8] : memref<32x32xf32, #tpu.memory_space<vmem>>, vector<32x32xf32>
    %cst_9 = arith.constant dense<0.000000e+00> : vector<64x32xf32>
    %8 = tpu.matmul %6, %7, %cst_9 {dimension_numbers = #tpu.dot_dimension_numbers<[1], [0], [0], [1], [0, 0, 1, 1], [], []>} : vector<64x32xf32>, vector<32x32xf32>, vector<64x32xf32> -> vector<64x32xf32>
    %9 = vector.shape_cast %8 : vector<64x32xf32> to vector<8x8x32xf32>
    %10 = vector.shape_cast %5 : vector<8x32xf32> to vector<8x1x32xf32>
    %11 = vector.broadcast %10 : vector<8x1x32xf32> to vector<8x8x32xf32>
    %12 = arith.addf %9, %11 : vector<8x8x32xf32>
    %13 = math.tanh %12 : vector<8x8x32xf32>
    %c0_10 = arith.constant 0 : index
    %c0_11 = arith.constant 0 : index
    %14 = vector.load %arg7[%c0_10, %c0_11] : memref<1x32xf32, #tpu.memory_space<vmem>>, vector<1x32xf32>
    %15 = vector.shape_cast %14 : vector<1x32xf32> to vector<1x1x32xf32>
    %16 = vector.broadcast %15 : vector<1x1x32xf32> to vector<8x8x32xf32>
    %17 = arith.mulf %13, %16 : vector<8x8x32xf32>
    %cst_12 = arith.constant dense<0.000000e+00> : vector<8x8xf32>
    %18 = vector.multi_reduction <add>, %17, %cst_12 [2] : vector<8x8x32xf32> to vector<8x8xf32>
    %cst_13 = arith.constant dense<0xFF800000> : vector<8xf32>
    %19 = vector.multi_reduction <maximumf>, %18, %cst_13 [1] : vector<8x8xf32> to vector<8xf32>
    %20 = vector.shape_cast %19 : vector<8xf32> to vector<8x1xf32>
    %21 = vector.broadcast %20 : vector<8x1xf32> to vector<8x8xf32>
    %22 = arith.subf %18, %21 : vector<8x8xf32>
    %23 = math.exp %22 : vector<8x8xf32>
    %cst_14 = arith.constant dense<0.000000e+00> : vector<8xf32>
    %24 = vector.multi_reduction <add>, %23, %cst_14 [1] : vector<8x8xf32> to vector<8xf32>
    %25 = vector.shape_cast %24 : vector<8xf32> to vector<8x1xf32>
    %26 = tpu.reciprocal %25 {approx = true} : vector<8x1xf32> -> vector<8x1xf32>
    %27 = vector.broadcast %26 : vector<8x1xf32> to vector<8x8xf32>
    %28 = arith.mulf %23, %27 : vector<8x8xf32>
    %c0_15 = arith.constant 0 : index
    %c0_16 = arith.constant 0 : index
    %c0_17 = arith.constant 0 : index
    %29 = vector.load %arg3[%c0_15, %c0_16, %c0_17] : memref<8x8x32xf32, #tpu.memory_space<vmem>>, vector<8x8x32xf32>
    %30 = vector.shape_cast %28 : vector<8x8xf32> to vector<8x8x1xf32>
    %31 = vector.broadcast %30 : vector<8x8x1xf32> to vector<8x8x32xf32>
    %32 = arith.mulf %31, %29 : vector<8x8x32xf32>
    %cst_18 = arith.constant dense<0.000000e+00> : vector<8x32xf32>
    %33 = vector.multi_reduction <add>, %32, %cst_18 [1] : vector<8x8x32xf32> to vector<8x32xf32>
    %c0_19 = arith.constant 0 : index
    %c0_20 = arith.constant 0 : index
    %34 = vector.load %arg8[%c0_19, %c0_20] : memref<8x32xf32, #tpu.memory_space<vmem>>, vector<8x32xf32>
    tpu.vector_store %arg8[%c0_19, %c0_20], %33 {strides = array<i32>} : memref<8x32xf32, #tpu.memory_space<vmem>>, vector<8x32xf32>,
    %c0_21 = arith.constant 0 : index
    %c0_22 = arith.constant 0 : index
    %35 = vector.load %arg9[%c0_21, %c0_22] : memref<8x8xf32, #tpu.memory_space<vmem>>, vector<8x8xf32>
    tpu.vector_store %arg9[%c0_21, %c0_22], %28 {strides = array<i32>} : memref<8x8xf32, #tpu.memory_space<vmem>>, vector<8x8xf32>,
    return
  }
  func.func @transform_0(%arg0: i32) -> (i32, i32) {
    %c0_i32 = arith.constant 0 : i32
    %c0_i32_0 = arith.constant 0 : i32
    return %arg0, %c0_i32 : i32, i32
  }
  func.func @transform_1(%arg0: i32) -> (i32, i32) {
    %c0_i32 = arith.constant 0 : i32
    %c0_i32_0 = arith.constant 0 : i32
    return %arg0, %c0_i32 : i32, i32
  }
  func.func @transform_2(%arg0: i32) -> (i32, i32, i32) {
    %c0_i32 = arith.constant 0 : i32
    %c0_i32_0 = arith.constant 0 : i32
    %c0_i32_1 = arith.constant 0 : i32
    return %arg0, %c0_i32, %c0_i32_0 : i32, i32, i32
  }
  func.func @transform_3(%arg0: i32) -> (i32, i32) {
    %c0_i32 = arith.constant 0 : i32
    %c0_i32_0 = arith.constant 0 : i32
    %c0_i32_1 = arith.constant 0 : i32
    return %c0_i32, %c0_i32_0 : i32, i32
  }
  func.func @transform_4(%arg0: i32) -> (i32, i32) {
    %c0_i32 = arith.constant 0 : i32
    %c0_i32_0 = arith.constant 0 : i32
    %c0_i32_1 = arith.constant 0 : i32
    return %c0_i32, %c0_i32_0 : i32, i32
  }
  func.func @transform_5(%arg0: i32) -> (i32, i32) {
    %c0_i32 = arith.constant 0 : i32
    %c0_i32_0 = arith.constant 0 : i32
    %c0_i32_1 = arith.constant 0 : i32
    return %c0_i32, %c0_i32_0 : i32, i32
  }
  func.func @transform_6(%arg0: i32) -> (i32, i32) {
    %c0_i32 = arith.constant 0 : i32
    %c0_i32_0 = arith.constant 0 : i32
    %c0_i32_1 = arith.constant 0 : i32
    return %c0_i32, %c0_i32_0 : i32, i32
  }
  func.func @transform_7(%arg0: i32) -> (i32, i32) {
    %c0_i32 = arith.constant 0 : i32
    %c0_i32_0 = arith.constant 0 : i32
    return %arg0, %c0_i32 : i32, i32
  }
  func.func @transform_8(%arg0: i32) -> (i32, i32) {
    %c0_i32 = arith.constant 0 : i32
    %c0_i32_0 = arith.constant 0 : i32
    return %arg0, %c0_i32 : i32, i32
  }
}

</mosaic_0001>

<llo_original>
// kernel: tpu_custom_call.1
$region0: #{tpu_custom_call.1}
  #allocation0 [shape = 'u32[]', space=smem, size = 0x4, offset = 0x4, fixed_abs, tag = 'smem constant byte address 0x4 - core index']
  #allocation1 [shape = 'u32[72,128]{1,0:T(1,128)}', space=vmem, size = 0x9000, scoped, tag = 'internal scratch']
  %s0 = inlined_call_operand.hbm [shape: f32[16,16], index: 0, kind: input, shape index: {}]
  %s1 = inlined_call_operand.vmem [shape: f32[128,32], index: 1, kind: input, shape index: {}]
  %s2 = inlined_call_operand.vmem [shape: f32[16,8,32], index: 2, kind: input, shape index: {}]
  %s3 = inlined_call_operand.hbm [shape: f32[16,32], index: 3, kind: input, shape index: {}]
  %s4 = inlined_call_operand.vmem [shape: f32[32,32], index: 4, kind: input, shape index: {}]
  %s5 = inlined_call_operand.vmem [shape: f32[1,32], index: 5, kind: input, shape index: {}]
  %s6 = inlined_call_operand.vmem [shape: f32[1,32], index: 6, kind: input, shape index: {}]
  %s7 = inlined_call_operand.hbm [shape: f32[16,32], index: 7, kind: output, shape index: {0}]
  %s8 = inlined_call_operand.vmem [shape: f32[16,8], index: 8, kind: output, shape index: {1}]
  %9 = xla_tuple %s7, %s8
  %s10 = sld [smem:[#allocation0]]
  $region77: #{tpu_custom_call.1} parent=0
    _
  %s12 = ssub.s32 1, %s10
  %s13 = scalar_select 0, %s12, %s10
  $region1: #{tpu_custom_call.1} parent=0
    #allocation2 [shape = 'u8[8192]{0}', space=vmem, size = 0x2000, scoped, tag = 'input window, operand 0']
    #allocation3 [shape = 's32[2]{0}', space=sflag, size = 0x8, scoped, tag = 'scoped memory for tpu_custom_call.1']
    #allocation4 [shape = 's32[2]{0}', space=sflag, size = 0x8, scoped, tag = 'scoped memory for tpu_custom_call.1']
    #allocation5 [shape = 'u8[8192]{0}', space=vmem, size = 0x2000, scoped, tag = 'input window, operand 3, single buffered']
    #allocation6 [shape = 's32[1]{0}', space=sflag, size = 0x4, scoped, tag = 'scoped memory for tpu_custom_call.1']
    #allocation7 [shape = 'u8[8192]{0}', space=vmem, size = 0x2000, scoped, tag = 'output window, operand 0']
    %14 = vsyncpa [#allocation3], 0
    %s15 = scalar_lea.sflag [#allocation3], 1
    %16 = vsyncpa %s15, 0
    %17 = vsyncpa [#allocation6], 0
    %18 = vsyncpa [#allocation4], 0
    %s19 = scalar_lea.sflag [#allocation4], 1
    %20 = vsyncpa %s19, 0
    loop: start=0, step=1, limit=4
    $region2: #{tpu_custom_call.1} parent=1 // loop_pre_header
      _
    $region3: #{tpu_custom_call.1} parent=1 // loop_header
      %s22 = sphi 0, %s26
      %p23 = scmp.ge.s32.totalorder %s22, 4
      %s32 = sphi 0, %s34
      %s35 = sphi 0, %s32
      %s36 = sphi 0, %s35
      %s52 = sphi 0, %s36
      %s58 = sphi 0, %s60
      %s61 = sphi 0, %s58
      %s62 = sphi 0, %s61
      %s78 = sphi 0, %s62
      %s84 = sphi 0, %s86
      %s87 = sphi 0, %s84
      %s88 = sphi 0, %s87
      %s104 = sphi 0, %s88
      %s108 = sphi 0, %s108
      %s110 = sphi 0, %s108
      %s111 = sphi 0, %s110
      %s125 = sphi 0, %s111
      %s129 = sphi 0, %s129
      %s131 = sphi 0, %s129
      %s132 = sphi 0, %s131
      %s146 = sphi 0, %s132
      %s150 = sphi 0, %s150
      %s152 = sphi 0, %s150
      %s153 = sphi 0, %s152
      %s167 = sphi 0, %s153
      %s171 = sphi 0, %s171
      %s173 = sphi 0, %s171
      %s174 = sphi 0, %s173
      %s188 = sphi 0, %s174
      %s194 = sphi 0, %s196
      %s197 = sphi 0, %s194
      %s198 = sphi 0, %s197
      %s214 = sphi 0, %s198
      %s220 = sphi 0, %s222
      %s223 = sphi 0, %s220
      %s224 = sphi 0, %s223
      %s240 = sphi 0, %s224
    $region4: #{tpu_custom_call.1} parent=1 // loop_header_branch
      %25 = sbr.rel (%p23) target = $region8
    $region5: #{tpu_custom_call.1} parent=1 // loop_body
      %s27 = ssub.s32 %s22, 1
      %s28 = ssub.s32 %s22, 2
      %s29 = sadd.s32 %s22, 1
      %s30 = ssub.s32 %s22, %s29
      %p31 = scmp.eq.s32.totalorder %s30, 0
      %s33 = sadd.s32 %s32, 1
      %s34 = scalar_select %p31, %s32, %s33
      %p37 = pneg %p31
      %p38 = scmp.eq.s32.totalorder %s22, 1
      %p39 = por %p37, %p38
      %p40 = scmp.ne.s32.totalorder %s32, %s35
      %p41 = scmp.eq.s32.totalorder %s22, 0
      %p42 = por %p40, %p41
      %p43 = scmp.ne.s32.totalorder %s32, %s35
      %p44 = scmp.eq.s32.totalorder %s27, 1
      %p45 = por %p43, %p44
      %p46 = scmp.ne.s32.totalorder %s35, %s36
      %p47 = scmp.eq.s32.totalorder %s27, 0
      %p48 = por %p46, %p47
      %p49 = scmp.ne.s32.totalorder %s35, %s36
      %p50 = scmp.eq.s32.totalorder %s28, 1
      %p51 = por %p49, %p50
      %p53 = scmp.ne.s32.totalorder %s36, %s52
      %p54 = scmp.eq.s32.totalorder %s28, 0
      %p55 = por %p53, %p54
      %s56 = ssub.s32 %s22, %s29
      %p57 = scmp.eq.s32.totalorder %s56, 0
      %s59 = sadd.s32 %s58, 1
      %s60 = scalar_select %p57, %s58, %s59
      %p63 = pneg %p57
      %p64 = scmp.eq.s32.totalorder %s22, 1
      %p65 = por %p63, %p64
      %p66 = scmp.ne.s32.totalorder %s58, %s61
      %p67 = scmp.eq.s32.totalorder %s22, 0
      %p68 = por %p66, %p67
      %p69 = scmp.ne.s32.totalorder %s58, %s61
      %p70 = scmp.eq.s32.totalorder %s27, 1
      %p71 = por %p69, %p70
      %p72 = scmp.ne.s32.totalorder %s61, %s62
      %p73 = scmp.eq.s32.totalorder %s27, 0
      %p74 = por %p72, %p73
      %p75 = scmp.ne.s32.totalorder %s61, %s62
      %p76 = scmp.eq.s32.totalorder %s28, 1
      %p77 = por %p75, %p76
      %p79 = scmp.ne.s32.totalorder %s62, %s78
      %p80 = scmp.eq.s32.totalorder %s28, 0
      %p81 = por %p79, %p80
      %s82 = ssub.s32 %s22, %s29
      %p83 = scmp.eq.s32.totalorder %s82, 0
      %s85 = sadd.s32 %s84, 1
      %s86 = scalar_select %p83, %s84, %s85
      %p89 = pneg %p83
      %p90 = scmp.eq.s32.totalorder %s22, 1
      %p91 = por %p89, %p90
      %p92 = scmp.ne.s32.totalorder %s84, %s87
      %p93 = scmp.eq.s32.totalorder %s22, 0
      %p94 = por %p92, %p93
      %p95 = scmp.ne.s32.totalorder %s84, %s87
      %p96 = scmp.eq.s32.totalorder %s27, 1
      %p97 = por %p95, %p96
      %p98 = scmp.ne.s32.totalorder %s87, %s88
      %p99 = scmp.eq.s32.totalorder %s27, 0
      %p100 = por %p98, %p99
      %p101 = scmp.ne.s32.totalorder %s87, %s88
      %p102 = scmp.eq.s32.totalorder %s28, 1
      %p103 = por %p101, %p102
      %p105 = scmp.ne.s32.totalorder %s88, %s104
      %p106 = scmp.eq.s32.totalorder %s28, 0
      %p107 = por %p105, %p106
      %s109 = sadd.s32 %s108, 1
      %p112 = scmp.eq.s32.totalorder %s22, 1
      %p113 = scmp.ne.s32.totalorder %s108, %s110
      %p114 = scmp.eq.s32.totalorder %s22, 0
      %p115 = por %p113, %p114
      %p116 = scmp.ne.s32.totalorder %s108, %s110
      %p117 = scmp.eq.s32.totalorder %s27, 1
      %p118 = por %p116, %p117
      %p119 = scmp.ne.s32.totalorder %s110, %s111
      %p120 = scmp.eq.s32.totalorder %s27, 0
      %p121 = por %p119, %p120
      %p122 = scmp.ne.s32.totalorder %s110, %s111
      %p123 = scmp.eq.s32.totalorder %s28, 1
      %p124 = por %p122, %p123
      %p126 = scmp.ne.s32.totalorder %s111, %s125
      %p127 = scmp.eq.s32.totalorder %s28, 0
      %p128 = por %p126, %p127
      %s130 = sadd.s32 %s129, 1
      %p133 = scmp.eq.s32.totalorder %s22, 1
      %p134 = scmp.ne.s32.totalorder %s129, %s131
      %p135 = scmp.eq.s32.totalorder %s22, 0
      %p136 = por %p134, %p135
      %p137 = scmp.ne.s32.totalorder %s129, %s131
      %p138 = scmp.eq.s32.totalorder %s27, 1
      %p139 = por %p137, %p138
      %p140 = scmp.ne.s32.totalorder %s131, %s132
      %p141 = scmp.eq.s32.totalorder %s27, 0
      %p142 = por %p140, %p141
      %p143 = scmp.ne.s32.totalorder %s131, %s132
      %p144 = scmp.eq.s32.totalorder %s28, 1
      %p145 = por %p143, %p144
      %p147 = scmp.ne.s32.totalorder %s132, %s146
      %p148 = scmp.eq.s32.totalorder %s28, 0
      %p149 = por %p147, %p148
      %s151 = sadd.s32 %s150, 1
      %p154 = scmp.eq.s32.totalorder %s22, 1
      %p155 = scmp.ne.s32.totalorder %s150, %s152
      %p156 = scmp.eq.s32.totalorder %s22, 0
      %p157 = por %p155, %p156
      %p158 = scmp.ne.s32.totalorder %s150, %s152
      %p159 = scmp.eq.s32.totalorder %s27, 1
      %p160 = por %p158, %p159
      %p161 = scmp.ne.s32.totalorder %s152, %s153
      %p162 = scmp.eq.s32.totalorder %s27, 0
      %p163 = por %p161, %p162
      %p164 = scmp.ne.s32.totalorder %s152, %s153
      %p165 = scmp.eq.s32.totalorder %s28, 1
      %p166 = por %p164, %p165
      %p168 = scmp.ne.s32.totalorder %s153, %s167
      %p169 = scmp.eq.s32.totalorder %s28, 0
      %p170 = por %p168, %p169
      %s172 = sadd.s32 %s171, 1
      %p175 = scmp.eq.s32.totalorder %s22, 1
      %p176 = scmp.ne.s32.totalorder %s171, %s173
      %p177 = scmp.eq.s32.totalorder %s22, 0
      %p178 = por %p176, %p177
      %p179 = scmp.ne.s32.totalorder %s171, %s173
      %p180 = scmp.eq.s32.totalorder %s27, 1
      %p181 = por %p179, %p180
      %p182 = scmp.ne.s32.totalorder %s173, %s174
      %p183 = scmp.eq.s32.totalorder %s27, 0
      %p184 = por %p182, %p183
      %p185 = scmp.ne.s32.totalorder %s173, %s174
      %p186 = scmp.eq.s32.totalorder %s28, 1
      %p187 = por %p185, %p186
      %p189 = scmp.ne.s32.totalorder %s174, %s188
      %p190 = scmp.eq.s32.totalorder %s28, 0
      %p191 = por %p189, %p190
      %s192 = ssub.s32 %s22, %s29
      %p193 = scmp.eq.s32.totalorder %s192, 0
      %s195 = sadd.s32 %s194, 1
      %s196 = scalar_select %p193, %s194, %s195
      %p199 = pneg %p193
      %p200 = scmp.eq.s32.totalorder %s22, 1
      %p201 = por %p199, %p200
      %p202 = scmp.ne.s32.totalorder %s194, %s197
      %p203 = scmp.eq.s32.totalorder %s22, 0
      %p204 = por %p202, %p203
      %p205 = scmp.ne.s32.totalorder %s194, %s197
      %p206 = scmp.eq.s32.totalorder %s27, 1
      %p207 = por %p205, %p206
      %p208 = scmp.ne.s32.totalorder %s197, %s198
      %p209 = scmp.eq.s32.totalorder %s27, 0
      %p210 = por %p208, %p209
      %p211 = scmp.ne.s32.totalorder %s197, %s198
      %p212 = scmp.eq.s32.totalorder %s28, 1
      %p213 = por %p211, %p212
      %p215 = scmp.ne.s32.totalorder %s198, %s214
      %p216 = scmp.eq.s32.totalorder %s28, 0
      %p217 = por %p215, %p216
      %s218 = ssub.s32 %s22, %s29
      %p219 = scmp.eq.s32.totalorder %s218, 0
      %s221 = sadd.s32 %s220, 1
      %s222 = scalar_select %p219, %s220, %s221
      %p225 = pneg %p219
      %p226 = scmp.eq.s32.totalorder %s22, 1
      %p227 = por %p225, %p226
      %p228 = scmp.ne.s32.totalorder %s220, %s223
      %p229 = scmp.eq.s32.totalorder %s22, 0
      %p230 = por %p228, %p229
      %p231 = scmp.ne.s32.totalorder %s220, %s223
      %p232 = scmp.eq.s32.totalorder %s27, 1
      %p233 = por %p231, %p232
      %p234 = scmp.ne.s32.totalorder %s223, %s224
      %p235 = scmp.eq.s32.totalorder %s27, 0
      %p236 = por %p234, %p235
      %p237 = scmp.ne.s32.totalorder %s223, %s224
      %p238 = scmp.eq.s32.totalorder %s28, 1
      %p239 = por %p237, %p238
      %p241 = scmp.ne.s32.totalorder %s224, %s240
      %p242 = scmp.eq.s32.totalorder %s28, 0
      %p243 = por %p241, %p242
      %p244 = scmp.le.s32.totalorder 1, %s22
      %p245 = scmp.lt.s32.totalorder %s22, 3
      %p246 = pnand %p244, %p245
      %p247 = pneg %p246
      // Predicated region
      $region9: #{tpu_custom_call.1} parent=5 // pred_check
        _
      $region10: #{tpu_custom_call.1} parent=5 // pred_check_branch
        %249 = sbr.rel (%p246) target = $region12
      $region11: #{tpu_custom_call.1} parent=5 // pred_region
        %s250 = ssub.s32 %s22, 1
        // Predicated region
        $region13: #{tpu_custom_call.1} parent=11 // pred_check
          %p251 = pneg %p121
        $region14: #{tpu_custom_call.1} parent=11 // pred_check_branch
          %253 = sbr.rel (%p251) target = $region16
        $region15: #{tpu_custom_call.1} parent=11 // pred_region
          %255 = vsyncadd [#allocation6], 0
          %s256 = sshll.u32 %s3, 4
          %s257 = int_to_ptr.hbm [resolvable:$true] %s256
          %s258 = sshll.u32 [#allocation5], 4
          %s259 = int_to_ptr.vmem [resolvable:$true] %s258
          %264 = dma.hbm_to_vmem [thread:$0]  %s257, 256, %s259, [#allocation6], 128, 128, 8
        $region16: #{tpu_custom_call.1} parent=11 // pred_fallthru
          _
        // Predicated region
        $region17: #{tpu_custom_call.1} parent=11 // pred_check
          %p265 = pneg %p142
        $region18: #{tpu_custom_call.1} parent=11 // pred_check_branch
          %267 = sbr.rel (%p265) target = $region20
        $region19: #{tpu_custom_call.1} parent=11 // pred_region
          _
        $region20: #{tpu_custom_call.1} parent=11 // pred_fallthru
          _
        // Predicated region
        $region21: #{tpu_custom_call.1} parent=11 // pred_check
          %p268 = pneg %p163
        $region22: #{tpu_custom_call.1} parent=11 // pred_check_branch
          %270 = sbr.rel (%p268) target = $region24
        $region23: #{tpu_custom_call.1} parent=11 // pred_region
          _
        $region24: #{tpu_custom_call.1} parent=11 // pred_fallthru
          _
        // Predicated region
        $region25: #{tpu_custom_call.1} parent=11 // pred_check
          %p271 = pneg %p184
        $region26: #{tpu_custom_call.1} parent=11 // pred_check_branch
          %273 = sbr.rel (%p271) target = $region28
        $region27: #{tpu_custom_call.1} parent=11 // pred_region
          _
        $region28: #{tpu_custom_call.1} parent=11 // pred_fallthru
          _
      $region12: #{tpu_custom_call.1} parent=5 // pred_fallthru
        _
      %p274 = scmp.lt.s32.totalorder %s22, 2
      // Predicated region
      $region29: #{tpu_custom_call.1} parent=5 // pred_check
        %p275 = pneg %p274
      $region30: #{tpu_custom_call.1} parent=5 // pred_check_branch
        %277 = sbr.rel (%p275) target = $region32
      $region31: #{tpu_custom_call.1} parent=5 // pred_region
        // Predicated region
        $region33: #{tpu_custom_call.1} parent=31 // pred_check
          %p278 = pneg %p42
        $region34: #{tpu_custom_call.1} parent=31 // pred_check_branch
          %280 = sbr.rel (%p278) target = $region36
        $region35: #{tpu_custom_call.1} parent=31 // pred_region
          %s281 = sand.u32 %s32, 1
          %s282 = scalar_lea.sflag [#allocation3], %s281
          %s283 = sand.u32 %s32, 1
          %s284 = smul.addr %s283, 8
          %s285 = scalar_lea.vmem [#allocation2], %s284
          %287 = vsyncadd %s282, 0
          %s288 = smul.addr %s22, 8
          %s289 = scalar_lea.hbm %s0, %s288
          %s291 = sshll.u32 %s289, 4
          %s292 = int_to_ptr.hbm [resolvable:$true] %s291
          %s293 = sshll.u32 %s285, 4
          %s294 = int_to_ptr.vmem [resolvable:$true] %s293
          %296 = dma.hbm_to_vmem [thread:$0]  %s292, 128, %s294, %s282
        $region36: #{tpu_custom_call.1} parent=31 // pred_fallthru
          _
        // Predicated region
        $region37: #{tpu_custom_call.1} parent=31 // pred_check
          %p297 = pneg %p68
        $region38: #{tpu_custom_call.1} parent=31 // pred_check_branch
          %299 = sbr.rel (%p297) target = $region40
        $region39: #{tpu_custom_call.1} parent=31 // pred_region
          %s300 = smul.u32 8, %s22
          %p301 = scmp.lt.s32.totalorder %s300, 15
          %s302 = scalar_select %p301, %s300, 15
          %s303 = smul.addr %s302, 8
          %s304 = scalar_lea.vmem %s1, %s303
          %s305 = smul.u32 8, %s22
        $region40: #{tpu_custom_call.1} parent=31 // pred_fallthru
          _
        // Predicated region
        $region41: #{tpu_custom_call.1} parent=31 // pred_check
          %p306 = pneg %p94
        $region42: #{tpu_custom_call.1} parent=31 // pred_check_branch
          %308 = sbr.rel (%p306) target = $region44
        $region43: #{tpu_custom_call.1} parent=31 // pred_region
          %s309 = smul.u32 8, %s22
          %p310 = scmp.lt.s32.totalorder %s309, 15
          %s311 = scalar_select %p310, %s309, 15
          %s312 = smul.addr %s311, 8
          %s313 = scalar_lea.vmem %s2, %s312
          %s314 = smul.u32 8, %s22
        $region44: #{tpu_custom_call.1} parent=31 // pred_fallthru
          _
      $region32: #{tpu_custom_call.1} parent=5 // pred_fallthru
        _
      %p315 = scmp.le.s32.totalorder 1, %s22
      %p316 = scmp.lt.s32.totalorder %s22, 3
      %p317 = pnand %p315, %p316
      %p318 = pneg %p317
      // Predicated region
      $region45: #{tpu_custom_call.1} parent=5 // pred_check
        _
      $region46: #{tpu_custom_call.1} parent=5 // pred_check_branch
        %320 = sbr.rel (%p317) target = $region48
      $region47: #{tpu_custom_call.1} parent=5 // pred_region
        %s321 = ssub.s32 %s22, 1
        %s322 = sand.u32 %s35, 1
        %s323 = scalar_lea.sflag [#allocation3], %s322
        %s324 = sand.u32 %s35, 1
        %s325 = smul.addr %s324, 8
        %s326 = scalar_lea.vmem [#allocation2], %s325
        // Predicated region
        $region49: #{tpu_custom_call.1} parent=47 // pred_check
          %p327 = pneg %p48
        $region50: #{tpu_custom_call.1} parent=47 // pred_check_branch
          %329 = sbr.rel (%p327) target = $region52
        $region51: #{tpu_custom_call.1} parent=47 // pred_region
          %331 = dma.done %s323, 128
        $region52: #{tpu_custom_call.1} parent=47 // pred_fallthru
          _
        // Predicated region
        $region53: #{tpu_custom_call.1} parent=47 // pred_check
          %p332 = pneg %p121
        $region54: #{tpu_custom_call.1} parent=47 // pred_check_branch
          %334 = sbr.rel (%p332) target = $region56
        $region55: #{tpu_custom_call.1} parent=47 // pred_region
          %336 = dma.done [#allocation6], 256
        $region56: #{tpu_custom_call.1} parent=47 // pred_fallthru
          _
        %s337 = sand.u32 %s35, 1
        %s338 = scalar_lea.sflag [#allocation3], %s337
        %s339 = sand.u32 %s35, 1
        %s340 = smul.addr %s339, 8
        %s341 = scalar_lea.vmem [#allocation2], %s340
        %p342 = pneg %p48
        %p343 = pneg %p45
        %s344 = smul.u32 8, %s27
        %p345 = scmp.lt.s32.totalorder %s344, 15
        %s346 = scalar_select %p345, %s344, 15
        %s347 = smul.addr %s346, 8
        %s348 = scalar_lea.vmem %s1, %s347
        %p349 = pneg %p74
        %p350 = pneg %p71
        %s351 = smul.u32 8, %s27
        %p352 = scmp.lt.s32.totalorder %s351, 15
        %s353 = scalar_select %p352, %s351, 15
        %s354 = smul.addr %s353, 8
        %s355 = scalar_lea.vmem %s2, %s354
        %p356 = pneg %p100
        %p357 = pneg %p97
        %p358 = pneg %p121
        %p359 = pneg %p118
        %p360 = pneg %p142
        %p361 = pneg %p139
        %p362 = pneg %p163
        %p363 = pneg %p160
        %p364 = pneg %p184
        %p365 = pneg %p181
        %p366 = pneg %p210
        %p367 = pneg %p207
        %s368 = sand.u32 %s197, 1
        %s369 = scalar_lea.sflag [#allocation4], %s368
        %s370 = sand.u32 %s197, 1
        %s371 = smul.addr %s370, 8
        %s372 = scalar_lea.vmem [#allocation7], %s371
        %p373 = pneg %p236
        %p374 = pneg %p233
        %p375 = scmp.lt.s32.totalorder %s27, 1
        %s376 = scalar_select %p375, %s27, 1
        %s377 = smul.addr %s376, 8
        %s378 = scalar_lea.vmem %s8, %s377
        %s379 = smul.u32 8, %s27
        %p380 = scmp.lt.s32.totalorder %s379, 15
        %s381 = scalar_select %p380, %s379, 15
        %s382 = smul.addr %s381, 8
        %s383 = scalar_lea.vmem %s1, %s382
        %s384 = smul.u32 8, %s27
        %s385 = smul.u32 8, %s27
        %p386 = scmp.lt.s32.totalorder %s385, 15
        %s387 = scalar_select %p386, %s385, 15
        %s388 = smul.addr %s387, 8
        %s389 = scalar_lea.vmem %s2, %s388
        %s390 = smul.u32 8, %s27
        %p391 = scmp.lt.s32.totalorder %s27, 1
        %s392 = scalar_select %p391, %s27, 1
        %s393 = smul.addr %s392, 8
        %s394 = scalar_lea.vmem %s8, %s393
        %v395 = vld [vmem:[%s326] sm:$0xff]
        %v396 = vld [vmem:[#allocation5] sm:$0xff]
        %v397 = vld [vmem:[#allocation5 + $0x8] sm:$0xff]
        %v398 = vld [vmem:[%s5] sm:$0x1]
        %v400 = vperm.slane %v398, 0
        %vm402 = vcmask 130048
        %v404 = vsel %vm402, %v395, 0
        %406 = vmatpush.msra.mxu0 0.0
        %407 = vmatpush.msra.mxu0 0.0
        %408 = vmatpush.msra.mxu0 0.0
        %409 = vmatpush.msra.mxu0 0.0
        %410 = vmatpush.msra.mxu0 0.0
        %411 = vmatpush.msra.mxu0 0.0
        %412 = vmatpush.msra.mxu0 0.0
        %413 = vmatpush.msra.mxu0 0.0
        %414 = vmatpush.msra.mxu0 0.0
        %415 = vmatpush.msra.mxu0 0.0
        %416 = vmatpush.msra.mxu0 0.0
        %417 = vmatpush.msra.mxu0 0.0
        %418 = vmatpush.msra.mxu0 0.0
        %419 = vmatpush.msra.mxu0 0.0
        %420 = vmatpush.msra.mxu0 %v397
        %421 = vmatpush.msra.mxu0 %v396
        %422 = vmatmul.f32.gmra.mxu0 %v404
        %v423 = vpop.f32.mrf.mxu0
        %v424 = vadd.f32 %v400, %v423
        %425 = vdwg.mxu0
        %v426 = vld [vmem:[%s383] sm:$0xff]
        %v427 = vld [vmem:[%s383 + $0x8] sm:$0xff]
        %v428 = vld [vmem:[%s383 + $0x10] sm:$0xff]
        %v429 = vld [vmem:[%s383 + $0x18] sm:$0xff]
        %v430 = vld [vmem:[%s383 + $0x20] sm:$0xff]
        %v431 = vld [vmem:[%s383 + $0x28] sm:$0xff]
        %v432 = vld [vmem:[%s383 + $0x30] sm:$0xff]
        %v433 = vld [vmem:[%s383 + $0x38] sm:$0xff]
        %v434 = vld [vmem:[%s4] sm:$0xff]
        %v435 = vld [vmem:[%s4 + $0x8] sm:$0xff]
        %v436 = vld [vmem:[%s4 + $0x10] sm:$0xff]
        %v437 = vld [vmem:[%s4 + $0x18] sm:$0xff]
        %vm438 = vcmask 261120
        %v440 = vsel %vm438, %v426, 0
        %v443 = vsel %vm438, %v427, 0
        %v446 = vsel %vm438, %v428, 0
        %v449 = vsel %vm438, %v429, 0
        %v452 = vsel %vm438, %v430, 0
        %v455 = vsel %vm438, %v431, 0
        %v458 = vsel %vm438, %v432, 0
        %v461 = vsel %vm438, %v433, 0
        %463 = vmatpush.msra.mxu0 0.0
        %464 = vmatpush.msra.mxu0 0.0
        %465 = vmatpush.msra.mxu0 0.0
        %466 = vmatpush.msra.mxu0 0.0
        %467 = vmatpush.msra.mxu0 0.0
        %468 = vmatpush.msra.mxu0 0.0
        %469 = vmatpush.msra.mxu0 0.0
        %470 = vmatpush.msra.mxu0 0.0
        %471 = vmatpush.msra.mxu0 0.0
        %472 = vmatpush.msra.mxu0 0.0
        %473 = vmatpush.msra.mxu0 0.0
        %474 = vmatpush.msra.mxu0 0.0
        %475 = vmatpush.msra.mxu0 %v437
        %476 = vmatpush.msra.mxu0 %v436
        %477 = vmatpush.msra.mxu0 %v435
        %478 = vmatpush.msra.mxu0 %v434
        %479 = vmatmul.f32.gmra.mxu0 %v440
        %v480 = vpop.f32.mrf.mxu0
        %v481 = vadd.f32 0.0, %v480
        %482 = vmatmul.f32.gmra.mxu0 %v443
        %v483 = vpop.f32.mrf.mxu0
        %v484 = vadd.f32 0.0, %v483
        %485 = vmatmul.f32.gmra.mxu0 %v446
        %v486 = vpop.f32.mrf.mxu0
        %v487 = vadd.f32 0.0, %v486
        %488 = vmatmul.f32.gmra.mxu0 %v449
        %v489 = vpop.f32.mrf.mxu0
        %v490 = vadd.f32 0.0, %v489
        %491 = vmatmul.f32.gmra.mxu0 %v452
        %v492 = vpop.f32.mrf.mxu0
        %v493 = vadd.f32 0.0, %v492
        %494 = vmatmul.f32.gmra.mxu0 %v455
        %v495 = vpop.f32.mrf.mxu0
        %v496 = vadd.f32 0.0, %v495
        %497 = vmatmul.f32.gmra.mxu0 %v458
        %v498 = vpop.f32.mrf.mxu0
        %v499 = vadd.f32 0.0, %v498
        %500 = vmatmul.f32.gmra.mxu0 %v461
        %v501 = vpop.f32.mrf.mxu0
        %v502 = vadd.f32 0.0, %v501
        %503 = vdwg.mxu0
        %v505 = vrot.slane %v424, 1
        %v506 = vrot.slane %v424, 2
        %v507 = vrot.slane %v424, 3
        %v508 = vrot.slane %v424, 4
        %v509 = vrot.slane %v424, 5
        %v510 = vrot.slane %v424, 6
        %v511 = vrot.slane %v424, 7
        %v512 = vperm.slane %v424, 0
        %v513 = vperm.slane %v505, 0
        %v514 = vperm.slane %v506, 0
        %v515 = vperm.slane %v507, 0
        %v516 = vperm.slane %v508, 0
        %v517 = vperm.slane %v509, 0
        %v518 = vperm.slane %v510, 0
        %v519 = vperm.slane %v511, 0
        %v528 = vadd.f32 %v481, %v512
        %v529 = vadd.f32 %v484, %v513
        %v530 = vadd.f32 %v487, %v514
        %v531 = vadd.f32 %v490, %v515
        %v532 = vadd.f32 %v493, %v516
        %v533 = vadd.f32 %v496, %v517
        %v534 = vadd.f32 %v499, %v518
        %v535 = vadd.f32 %v502, %v519
        %v536 = vtanh.pop %v528
        %v537 = vtanh.pop %v529
        %v538 = vtanh.pop %v530
        %v539 = vtanh.pop %v531
        %v540 = vtanh.pop %v532
        %v541 = vtanh.pop %v533
        %v542 = vtanh.pop %v534
        %v543 = vtanh.pop %v535
        %v544 = vld [vmem:[%s6] sm:$0x1]
        %v546 = vperm.slane %v544, 0
        %v548 = vmul.f32 %v536, %v546
        %v549 = vmul.f32 %v537, %v546
        %v550 = vmul.f32 %v538, %v546
        %v551 = vmul.f32 %v539, %v546
        %v552 = vmul.f32 %v540, %v546
        %v553 = vmul.f32 %v541, %v546
        %v554 = vmul.f32 %v542, %v546
        %v555 = vmul.f32 %v543, %v546
        %v556 = vsel %vm438, %v548, 0.0
        %557 = vadd.xlane.f32.xlu0 %v556
        %v558 = vpop.xlane.xlu0 %557
        %v559 = vsel %vm438, %v549, 0.0
        %560 = vadd.xlane.f32.xlu0 %v559
        %v561 = vpop.xlane.xlu0 %560
        %v562 = vsel %vm438, %v550, 0.0
        %563 = vadd.xlane.f32.xlu0 %v562
        %v564 = vpop.xlane.xlu0 %563
        %v565 = vsel %vm438, %v551, 0.0
        %566 = vadd.xlane.f32.xlu0 %v565
        %v567 = vpop.xlane.xlu0 %566
        %v568 = vsel %vm438, %v552, 0.0
        %569 = vadd.xlane.f32.xlu0 %v568
        %v570 = vpop.xlane.xlu0 %569
        %v571 = vsel %vm438, %v553, 0.0
        %572 = vadd.xlane.f32.xlu0 %v571
        %v573 = vpop.xlane.xlu0 %572
        %v574 = vsel %vm438, %v554, 0.0
        %575 = vadd.xlane.f32.xlu0 %v574
        %v576 = vpop.xlane.xlu0 %575
        %v577 = vsel %vm438, %v555, 0.0
        %578 = vadd.xlane.f32.xlu0 %v577
        %v579 = vpop.xlane.xlu0 %578
        %v588 = vlaneseq
        %v589 = vand.u32 %v588, 127
        %v590 = vperm.slane %v558, %v589
        %v591 = vperm.slane %v561, %v589
        %v592 = vperm.slane %v564, %v589
        %v593 = vperm.slane %v567, %v589
        %v594 = vperm.slane %v570, %v589
        %v595 = vperm.slane %v573, %v589
        %v596 = vperm.slane %v576, %v589
        %v597 = vperm.slane %v579, %v589
        %vm598 = vcmask 1041409
        %v599 = vsel %vm598, %v591, %v590
        %vm600 = vcmask 1042434
        %v601 = vsel %vm600, %v592, %v599
        %vm602 = vcmask 1043459
        %v603 = vsel %vm602, %v593, %v601
        %vm604 = vcmask 1044484
        %v605 = vsel %vm604, %v594, %v603
        %vm606 = vcmask 1045509
        %v607 = vsel %vm606, %v595, %v605
        %vm608 = vcmask 1046534
        %v609 = vsel %vm608, %v596, %v607
        %vm610 = vcmask 1047559
        %v611 = vsel %vm610, %v597, %v609
        %vm613 = vcmask 64512
        %v614 = vsel %vm613, %v611, -inf
        %615 = vmax.xlane.f32.xlu0 %v614
        %v616 = vpop.xlane.xlu0 %615
        %v618 = vperm.slane %v616, 0
        %v619 = vperm.slane %v616, 1
        %v620 = vperm.slane %v616, 2
        %v621 = vperm.slane %v616, 3
        %v622 = vperm.slane %v616, 4
        %v623 = vperm.slane %v616, 5
        %v624 = vperm.slane %v616, 6
        %v625 = vperm.slane %v616, 7
        %v634 = vsub.f32 %v558, %v618
        %v635 = vsub.f32 %v561, %v619
        %v636 = vsub.f32 %v564, %v620
        %v637 = vsub.f32 %v567, %v621
        %v638 = vsub.f32 %v570, %v622
        %v639 = vsub.f32 %v573, %v623
        %v640 = vsub.f32 %v576, %v624
        %v641 = vsub.f32 %v579, %v625
        %v642 = vmul.f32 %v634, 1.442695
        %v643 = vpow.pop %v642
        %v644 = vmul.f32 %v635, 1.442695
        %v645 = vpow.pop %v644
        %v646 = vmul.f32 %v636, 1.442695
        %v647 = vpow.pop %v646
        %v648 = vmul.f32 %v637, 1.442695
        %v649 = vpow.pop %v648
        %v650 = vmul.f32 %v638, 1.442695
        %v651 = vpow.pop %v650
        %v652 = vmul.f32 %v639, 1.442695
        %v653 = vpow.pop %v652
        %v654 = vmul.f32 %v640, 1.442695
        %v655 = vpow.pop %v654
        %v656 = vmul.f32 %v641, 1.442695
        %v657 = vpow.pop %v656
        %666 = vset.pattern.permute.xlu0 0
        %667 = vperm.xlu0 %666, %v643
        %v668 = vpop.permute.xlu0 %667
        %669 = vset.pattern.permute.xlu0 0
        %670 = vperm.xlu0 %669, %v645
        %v671 = vpop.permute.xlu0 %670
        %672 = vset.pattern.permute.xlu0 0
        %673 = vperm.xlu0 %672, %v647
        %v674 = vpop.permute.xlu0 %673
        %675 = vset.pattern.permute.xlu0 0
        %676 = vperm.xlu0 %675, %v649
        %v677 = vpop.permute.xlu0 %676
        %678 = vset.pattern.permute.xlu0 0
        %679 = vperm.xlu0 %678, %v651
        %v680 = vpop.permute.xlu0 %679
        %681 = vset.pattern.permute.xlu0 0
        %682 = vperm.xlu0 %681, %v653
        %v683 = vpop.permute.xlu0 %682
        %684 = vset.pattern.permute.xlu0 0
        %685 = vperm.xlu0 %684, %v655
        %v686 = vpop.permute.xlu0 %685
        %687 = vset.pattern.permute.xlu0 0
        %688 = vperm.xlu0 %687, %v657
        %v689 = vpop.permute.xlu0 %688
        %v690 = vperm.slane %v668, %v589
        %v691 = vperm.slane %v671, %v589
        %v692 = vperm.slane %v674, %v589
        %v693 = vperm.slane %v677, %v589
        %v694 = vperm.slane %v680, %v589
        %v695 = vperm.slane %v683, %v589
        %v696 = vperm.slane %v686, %v589
        %v697 = vperm.slane %v689, %v589
        %v698 = vsel %vm598, %v691, %v690
        %v699 = vsel %vm600, %v692, %v698
        %v700 = vsel %vm602, %v693, %v699
        %v701 = vsel %vm604, %v694, %v700
        %v702 = vsel %vm606, %v695, %v701
        %v703 = vsel %vm608, %v696, %v702
        %v704 = vsel %vm610, %v697, %v703
        %v706 = vsel %vm613, %v704, 0.0
        %707 = vadd.xlane.f32.xlu0 %v706
        %v708 = vpop.xlane.xlu0 %707
        %v709 = vrcp.pop %v708
        %v711 = vperm.slane %v709, 0
        %v712 = vperm.slane %v709, 1
        %v713 = vperm.slane %v709, 2
        %v714 = vperm.slane %v709, 3
        %v715 = vperm.slane %v709, 4
        %v716 = vperm.slane %v709, 5
        %v717 = vperm.slane %v709, 6
        %v718 = vperm.slane %v709, 7
        %v727 = vmul.f32 %v643, %v711
        %v728 = vmul.f32 %v645, %v712
        %v729 = vmul.f32 %v647, %v713
        %v730 = vmul.f32 %v649, %v714
        %v731 = vmul.f32 %v651, %v715
        %v732 = vmul.f32 %v653, %v716
        %v733 = vmul.f32 %v655, %v717
        %v734 = vmul.f32 %v657, %v718
        %v735 = vld [vmem:[%s389] sm:$0xff]
        %v736 = vld [vmem:[%s389 + $0x8] sm:$0xff]
        %v737 = vld [vmem:[%s389 + $0x10] sm:$0xff]
        %v738 = vld [vmem:[%s389 + $0x18] sm:$0xff]
        %v739 = vld [vmem:[%s389 + $0x20] sm:$0xff]
        %v740 = vld [vmem:[%s389 + $0x28] sm:$0xff]
        %v741 = vld [vmem:[%s389 + $0x30] sm:$0xff]
        %v742 = vld [vmem:[%s389 + $0x38] sm:$0xff]
        %744 = vset.pattern.permute.xlu0 0
        %745 = vperm.xlu0 %744, %v727
        %v746 = vpop.permute.xlu0 %745
        %749 = vset.pattern.permute.xlu0 0
        %750 = vperm.xlu0 %749, %v728
        %v751 = vpop.permute.xlu0 %750
        %754 = vset.pattern.permute.xlu0 0
        %755 = vperm.xlu0 %754, %v729
        %v756 = vpop.permute.xlu0 %755
        %759 = vset.pattern.permute.xlu0 0
        %760 = vperm.xlu0 %759, %v730
        %v761 = vpop.permute.xlu0 %760
        %764 = vset.pattern.permute.xlu0 0
        %765 = vperm.xlu0 %764, %v731
        %v766 = vpop.permute.xlu0 %765
        %769 = vset.pattern.permute.xlu0 0
        %770 = vperm.xlu0 %769, %v732
        %v771 = vpop.permute.xlu0 %770
        %774 = vset.pattern.permute.xlu0 0
        %775 = vperm.xlu0 %774, %v733
        %v776 = vpop.permute.xlu0 %775
        %779 = vset.pattern.permute.xlu0 0
        %780 = vperm.xlu0 %779, %v734
        %v781 = vpop.permute.xlu0 %780
        %v783 = vmul.f32 %v746, %v735
        %v784 = vmul.f32 %v751, %v736
        %v785 = vmul.f32 %v756, %v737
        %v786 = vmul.f32 %v761, %v738
        %v787 = vmul.f32 %v766, %v739
        %v788 = vmul.f32 %v771, %v740
        %v789 = vmul.f32 %v776, %v741
        %v790 = vmul.f32 %v781, %v742
        %v791 = vsel %vm438, %v783, 0.0
        %v792 = vrot.slane %v791, 4
        %v793 = vadd.f32 %v791, %v792
        %v794 = vrot.slane %v793, 2
        %v795 = vadd.f32 %v793, %v794
        %v796 = vrot.slane %v795, 1
        %v797 = vadd.f32 %v795, %v796
        %v798 = vsel %vm438, %v784, 0.0
        %v799 = vrot.slane %v798, 4
        %v800 = vadd.f32 %v798, %v799
        %v801 = vrot.slane %v800, 2
        %v802 = vadd.f32 %v800, %v801
        %v803 = vrot.slane %v802, 1
        %v804 = vadd.f32 %v802, %v803
        %v805 = vsel %vm438, %v785, 0.0
        %v806 = vrot.slane %v805, 4
        %v807 = vadd.f32 %v805, %v806
        %v808 = vrot.slane %v807, 2
        %v809 = vadd.f32 %v807, %v808
        %v810 = vrot.slane %v809, 1
        %v811 = vadd.f32 %v809, %v810
        %v812 = vsel %vm438, %v786, 0.0
        %v813 = vrot.slane %v812, 4
        %v814 = vadd.f32 %v812, %v813
        %v815 = vrot.slane %v814, 2
        %v816 = vadd.f32 %v814, %v815
        %v817 = vrot.slane %v816, 1
        %v818 = vadd.f32 %v816, %v817
        %v819 = vsel %vm438, %v787, 0.0
        %v820 = vrot.slane %v819, 4
        %v821 = vadd.f32 %v819, %v820
        %v822 = vrot.slane %v821, 2
        %v823 = vadd.f32 %v821, %v822
        %v824 = vrot.slane %v823, 1
        %v825 = vadd.f32 %v823, %v824
        %v826 = vsel %vm438, %v788, 0.0
        %v827 = vrot.slane %v826, 4
        %v828 = vadd.f32 %v826, %v827
        %v829 = vrot.slane %v828, 2
        %v830 = vadd.f32 %v828, %v829
        %v831 = vrot.slane %v830, 1
        %v832 = vadd.f32 %v830, %v831
        %v833 = vsel %vm438, %v789, 0.0
        %v834 = vrot.slane %v833, 4
        %v835 = vadd.f32 %v833, %v834
        %v836 = vrot.slane %v835, 2
        %v837 = vadd.f32 %v835, %v836
        %v838 = vrot.slane %v837, 1
        %v839 = vadd.f32 %v837, %v838
        %v840 = vsel %vm438, %v790, 0.0
        %v841 = vrot.slane %v840, 4
        %v842 = vadd.f32 %v840, %v841
        %v843 = vrot.slane %v842, 2
        %v844 = vadd.f32 %v842, %v843
        %v845 = vrot.slane %v844, 1
        %v846 = vadd.f32 %v844, %v845
        %v855 = vsel %vm598, %v804, %v797
        %v856 = vsel %vm600, %v811, %v855
        %v857 = vsel %vm602, %v818, %v856
        %v858 = vsel %vm604, %v825, %v857
        %v859 = vsel %vm606, %v832, %v858
        %v860 = vsel %vm608, %v839, %v859
        %v861 = vsel %vm610, %v846, %v860
        %863 = vst.msk [vmem:[%s372] sm:$0xff] %vm438, %v861
        %v864 = vperm.slane %v746, %v589
        %v865 = vperm.slane %v751, %v589
        %v866 = vperm.slane %v756, %v589
        %v867 = vperm.slane %v761, %v589
        %v868 = vperm.slane %v766, %v589
        %v869 = vperm.slane %v771, %v589
        %v870 = vperm.slane %v776, %v589
        %v871 = vperm.slane %v781, %v589
        %v872 = vsel %vm598, %v865, %v864
        %v873 = vsel %vm600, %v866, %v872
        %v874 = vsel %vm602, %v867, %v873
        %v875 = vsel %vm604, %v868, %v874
        %v876 = vsel %vm606, %v869, %v875
        %v877 = vsel %vm608, %v870, %v876
        %v878 = vsel %vm610, %v871, %v877
        %880 = vst.msk [vmem:[%s394] sm:$0xff] %vm613, %v878
        %s881 = sand.u32 %s197, 1
        %s882 = scalar_lea.sflag [#allocation4], %s881
        %s883 = sand.u32 %s197, 1
        %s884 = smul.addr %s883, 8
        %s885 = scalar_lea.vmem [#allocation7], %s884
        %p886 = scmp.lt.s32.totalorder %s27, 1
        %s887 = scalar_select %p886, %s27, 1
        %s888 = smul.addr %s887, 8
        %s889 = scalar_lea.vmem %s8, %s888
        // Predicated region
        $region57: #{tpu_custom_call.1} parent=47 // pred_check
          %p890 = pneg %p207
        $region58: #{tpu_custom_call.1} parent=47 // pred_check_branch
          %892 = sbr.rel (%p890) target = $region60
        $region59: #{tpu_custom_call.1} parent=47 // pred_region
          %894 = vsyncadd %s882, 0
          %s895 = smul.addr %s27, 8
          %s896 = scalar_lea.hbm %s7, %s895
          %s898 = sshll.u32 %s885, 4
          %s899 = int_to_ptr.vmem [resolvable:$true] %s898
          %s900 = sshll.u32 %s896, 4
          %s901 = int_to_ptr.hbm [resolvable:$true] %s900
          %903 = dma.vmem_to_hbm [thread:$0]  %s899, 128, %s901, %s882
        $region60: #{tpu_custom_call.1} parent=47 // pred_fallthru
          _
        // Predicated region
        $region61: #{tpu_custom_call.1} parent=47 // pred_check
          %p904 = pneg %p233
        $region62: #{tpu_custom_call.1} parent=47 // pred_check_branch
          %906 = sbr.rel (%p904) target = $region64
        $region63: #{tpu_custom_call.1} parent=47 // pred_region
          _
        $region64: #{tpu_custom_call.1} parent=47 // pred_fallthru
          _
      $region48: #{tpu_custom_call.1} parent=5 // pred_fallthru
        _
      %p907 = scmp.le.s32.totalorder 2, %s22
      // Predicated region
      $region65: #{tpu_custom_call.1} parent=5 // pred_check
        %p908 = pneg %p907
      $region66: #{tpu_custom_call.1} parent=5 // pred_check_branch
        %910 = sbr.rel (%p908) target = $region68
      $region67: #{tpu_custom_call.1} parent=5 // pred_region
        %s911 = ssub.s32 %s22, 2
        // Predicated region
        $region69: #{tpu_custom_call.1} parent=67 // pred_check
          %p912 = pneg %p213
        $region70: #{tpu_custom_call.1} parent=67 // pred_check_branch
          %914 = sbr.rel (%p912) target = $region72
        $region71: #{tpu_custom_call.1} parent=67 // pred_region
          %s915 = sand.u32 %s198, 1
          %s916 = scalar_lea.sflag [#allocation4], %s915
          %s917 = sand.u32 %s198, 1
          %s918 = smul.addr %s917, 8
          %s919 = scalar_lea.vmem [#allocation7], %s918
          %921 = dma.done %s916, 128
        $region72: #{tpu_custom_call.1} parent=67 // pred_fallthru
          _
        // Predicated region
        $region73: #{tpu_custom_call.1} parent=67 // pred_check
          %p922 = pneg %p239
        $region74: #{tpu_custom_call.1} parent=67 // pred_check_branch
          %924 = sbr.rel (%p922) target = $region76
        $region75: #{tpu_custom_call.1} parent=67 // pred_region
          %p925 = scmp.lt.s32.totalorder %s28, 1
          %s926 = scalar_select %p925, %s28, 1
          %s927 = smul.addr %s926, 8
          %s928 = scalar_lea.vmem %s8, %s927
        $region76: #{tpu_custom_call.1} parent=67 // pred_fallthru
          _
      $region68: #{tpu_custom_call.1} parent=5 // pred_fallthru
        _
    $region6: #{tpu_custom_call.1} parent=1 // loop_footer
      %s26 = sadd.s32 1, %s22
    $region7: #{tpu_custom_call.1} parent=1 // loop_footer_branch
      %21 = sbr.rel target = $region3
    $region8: #{tpu_custom_call.1} parent=1 // loop_exit
      _
    %929 = vsyncpa [#allocation3], 1
    %s930 = scalar_lea.sflag [#allocation3], 1
    %931 = vsyncpa %s930, 1
    %932 = vsyncpa [#allocation6], 1
    %933 = vsyncpa [#allocation4], 1
    %s934 = scalar_lea.sflag [#allocation4], 1
    %935 = vsyncpa %s934, 1

</llo_original>
